<compile_context>
chip_gen: v6e
topology: v6e:2x2x1
jax: 0.10.0
libtpu: 0.0.40
codegen_flags: <defaults>
</compile_context>

<pallas_src>
import functools
import math

import jax
import jax.numpy as jnp
import numpy as np
from jax.experimental import pallas as pl
from jax.experimental.pallas import tpu as pltpu


# ----------------------------------------------------------------------------- helpers
def _silu(x):
    return x * jax.nn.sigmoid(x)


def _layernorm(x, gamma, beta, eps=1e-5):
    mean = jnp.mean(x, axis=-1, keepdims=True)
    var = jnp.mean((x - mean) ** 2, axis=-1, keepdims=True)
    return (x - mean) * jax.lax.rsqrt(var + eps) * gamma + beta


def _bf16(x):
    return x.astype(jnp.bfloat16)


def _largest_tile(total, limit):
    # largest divisor of `total` that is a multiple of 8 and <= limit; fallback: full dim
    best = None
    t = 8
    while t <= min(total, limit):
        if total % t == 0:
            best = t
        t += 8
    return best if best is not None else total


def _vmem_limit_bytes():
    """Generation-aware VMEM request: ~85% of the physical per-core VMEM.
    v7x (64 MiB/TC) -> ~54 MiB, v5e/v6e (128 MiB) -> ~108 MiB.  Never request the
    full physical size (the compiler needs internal-scratch headroom)."""
    phys = None
    try:
        info = pltpu.get_tpu_info()
        phys = getattr(info, "vmem_capacity_bytes", None)
    except Exception:
        phys = None
    if not phys or phys <= 0:
        phys = 64 * 1024 * 1024  # conservative fallback == smallest (v7x) per-TC VMEM
    return int(phys * 0.85)


def _edge_i_tile(N, D, E, R, edge_itemsize, vmem_limit):
    """Size the K2 i-tile from the actual VMEM budget instead of a fixed cap."""
    dp, ep, rp = max(D, 128), max(E, 128), max(R, 128)
    invariant = (
        2 * N * dp * 2                                 # ne_all (bf16, double-buffered)
        + 2 * N * ep * 4                               # agg resident output (2 bufs)
        + 2 * N * 4                                    # msum resident output
        + N * ep * 4                                   # src_proj scratch
        + 2 * (2 * D * ep + R * ep + 2 * E * ep) * 2   # weights (bf16, 2 bufs)
        + (6 << 20)                                    # headroom (small blocks + internals)
    )
    per_i = (
        2 * N * ep * edge_itemsize                     # edge_out block (double-buffered)
        + 2 * N * 4                                    # edge-mask block (2 bufs)
        + 2 * dp * 2 + 2 * 128 * 4                     # ne_i / pos_i blocks
        + N * rp * 4                                   # live (TI, N, R) rbf/z intermediate
        + 3 * N * ep * 4                               # live (TI*N, E) MLP intermediates
    )
    avail = max(vmem_limit - invariant, 8 * per_i)
    return _largest_tile(N, max(8, avail // per_i))


# ----------------------------------------------------------------------------- kernels
def node_embedder_kernel(x_ref, w_ref, b_ref, g_ref, be_ref, out_ref, out_bf_ref):
    # x: (TM, D) already-gathered embedding rows.  SiLU -> Linear -> LayerNorm.
    x = _silu(x_ref[...])
    h = jnp.dot(_bf16(x), w_ref[...], preferred_element_type=jnp.float32) + b_ref[...]
    y = _layernorm(h, g_ref[...], be_ref[...])
    out_ref[...] = y
    out_bf_ref[...] = y.astype(jnp.bfloat16)   # bf16 copy for the edge MLP, emitted in-kernel


def edge_kernel(pos_i_ref, pos_all_t_ref, ne_i_ref, ne_all_ref, mask_ref, mus_ref,
                w_src_ref, w_tar_ref, w_rbf_ref, b1_ref, w2_ref, b2_ref,
                w3_ref, b3_ref, g_ref, be_ref,
                edge_out_ref, agg_ref, msum_ref,
                src_proj_ref, *, inv_sigma):
    it = pl.program_id(1)

    pos_i = pos_i_ref[0]          # (TI, 3)  f32   i-tile coordinates
    pos_all_t = pos_all_t_ref[0]  # (3, N)   f32   all coordinates, transposed (N on lanes)
    ne_i = ne_i_ref[0]            # (TI, D)  bf16  target nodes (axis 1 of the edge tensor)
    mask = mask_ref[0]            # (TI, N)  f32

    ti, n = mask.shape
    e = w_src_ref.shape[1]
    r = w_rbf_ref.shape[0]

    # ---- init resident accumulators + per-batch hoisted source projection -----------
    @pl.when(it == 0)
    def _():
        agg_ref[...] = jnp.zeros_like(agg_ref)
        msum_ref[...] = jnp.zeros_like(msum_ref)
        # src_proj depends only on the batch index, not the i-tile -> compute once / batch.
        src_proj_ref[...] = jnp.dot(ne_all_ref[0], w_src_ref[...],
                                    preferred_element_type=jnp.float32)       # (N, E)

    # ---- pairwise distance, computed directly in the (TI, N) lanes-on-N layout ------
    d0 = pos_i[:, 0:1] - pos_all_t[0:1, :]                # (TI, N)
    radial = d0 * d0
    for k in (1, 2):                                      # 3 static VPU passes, exact f32
        d = pos_i[:, k:k + 1] - pos_all_t[k:k + 1, :]
        radial = radial + d * d
    dist = jnp.sqrt(radial + 1e-10) * mask                # (TI, N)   (matches coord2dist)

    # ---- RBF expansion, masked (matches rbf() * edge_mask[..., None]) ----------------
    # z = (dist - mu)/sigma  computed as  dist*inv_sigma - mu/sigma  (folded in wrapper)
    mus = mus_ref[...]                                    # (1, R)  = mu/sigma
    z = dist[:, :, None] * inv_sigma - mus[None, :, :]    # (TI, N, R)
    rbf = jnp.exp(-(z * z)) * mask[:, :, None]            # (TI, N, R)

    # ---- edge MLP layer 1: concat [src, tar, rbf] decomposed into three matmuls ------
    tar_proj = jnp.dot(ne_i, w_tar_ref[...],
                       preferred_element_type=jnp.float32)                    # (TI, E)
    rbf_proj = jnp.dot(_bf16(rbf.reshape(ti * n, r)), w_rbf_ref[...],
                       preferred_element_type=jnp.float32).reshape(ti, n, e)  # (TI, N, E)
    h = src_proj_ref[...][None, :, :] + tar_proj[:, None, :] + rbf_proj + b1_ref[...]
    h = _silu(h).reshape(ti * n, e)

    # ---- edge MLP layers 2/3 + LayerNorm ---------------------------------------------
    h = _silu(jnp.dot(_bf16(h), w2_ref[...], preferred_element_type=jnp.float32)
              + b2_ref[...])
    h = jnp.dot(_bf16(h), w3_ref[...], preferred_element_type=jnp.float32) + b3_ref[...]
    h = _layernorm(h, g_ref[...], be_ref[...]).reshape(ti, n, e)

    # bf16 writeback by default (dominant HBM traffic); aggregation stays f32 below.
    edge_out_ref[0] = h.astype(edge_out_ref.dtype)

    # ---- accumulate (across i-tiles) the sum over source atoms and mask row counts ---
    agg_ref[0] = agg_ref[0] + jnp.sum(h, axis=0)                       # (N, E)
    msum_ref[0] = msum_ref[0] + jnp.sum(mask, axis=0, keepdims=True)   # (1, N)


def node_agg_kernel(ne_ref, es_ref, scale_ref, w1n_ref, w1a_ref, b1_ref,
                    w2_ref, b2_ref, w3_ref, b3_ref, g_ref, be_ref, out_ref):
    ne = ne_ref[...]                       # (TM, D) f32
    agg = es_ref[...] * scale_ref[...]     # (TM, E) = edge_sum * clamp(atom,1)/(mask_sum+eps)
    # first node_aggregator layer: concat [node_embed, src_node_agg] split into 2 matmuls
    h = (jnp.dot(_bf16(ne), w1n_ref[...], preferred_element_type=jnp.float32)
         + jnp.dot(_bf16(agg), w1a_ref[...], preferred_element_type=jnp.float32)
         + b1_ref[...])
    h = _silu(h)
    h = _silu(jnp.dot(_bf16(h), w2_ref[...], preferred_element_type=jnp.float32)
              + b2_ref[...])
    h = jnp.dot(_bf16(h), w3_ref[...], preferred_element_type=jnp.float32) + b3_ref[...]
    out_ref[...] = ne + _layernorm(h, g_ref[...], be_ref[...])     # residual


# ----------------------------------------------------------------------------- wrapper
def mol_embedder_pallas(params, ligand_atom, ligand_pos, edge_mask, mu, sigma,
                        edge_out_dtype=jnp.bfloat16):
    B, N = ligand_atom.shape
    D = params["ne_w"].shape[0]
    E = params["ee_w2"].shape[0]
    R = mu.shape[0]
    M = B * N
    f32, bf16 = jnp.float32, jnp.bfloat16

    vmem_limit = _vmem_limit_bytes()

    # K2 i-tile sized from the actual per-generation VMEM budget.
    TI = _edge_i_tile(N, D, E, R, jnp.dtype(edge_out_dtype).itemsize, vmem_limit)
    nI = N // TI
    # K1/K3 M-tile: these glue kernels are step-overhead / small-DMA dominated -> big blocks.
    tm_cap = max(512, min(4096, (vmem_limit // 3) // (12 * 4 * max(D, 128))))
    TM = _largest_tile(M, tm_cap)
    nM = M // TM

    mtile_params = pltpu.CompilerParams(dimension_semantics=("parallel",),
                                        vmem_limit_bytes=vmem_limit)

    # ---- K1: node embedder tail (SiLU -> Linear -> LayerNorm), M-tiled ----------------
    emb2d = params["emb_table"][ligand_atom].reshape(M, D)   # embedding gather (glue)
    node_embed2d, node_embed_bf2d = pl.pallas_call(
        node_embedder_kernel,
        out_shape=(jax.ShapeDtypeStruct((M, D), f32),
                   jax.ShapeDtypeStruct((M, D), bf16)),
        grid=(nM,),
        in_specs=[pl.BlockSpec((TM, D), lambda i: (i, 0)),
                  pl.BlockSpec((D, D), lambda i: (0, 0)),
                  pl.BlockSpec((1, D), lambda i: (0, 0)),
                  pl.BlockSpec((1, D), lambda i: (0, 0)),
                  pl.BlockSpec((1, D), lambda i: (0, 0))],
        out_specs=(pl.BlockSpec((TM, D), lambda i: (i, 0)),
                   pl.BlockSpec((TM, D), lambda i: (i, 0))),
        compiler_params=mtile_params,
    )(emb2d, params["ne_w"].astype(bf16), params["ne_b"].reshape(1, D),
      params["ne_g"].reshape(1, D), params["ne_be"].reshape(1, D))
    node_embed = node_embed2d.reshape(B, N, D)
    node_embed_bf = node_embed_bf2d.reshape(B, N, D)         # bf16 copy emitted by K1
    ligand_pos_t = jnp.transpose(ligand_pos, (0, 2, 1))      # (B, 3, N)

    # ---- K2: edge embedder + fused sum over source atoms + mask row counts ------------
    w_src = params["ee_w1"][:D].astype(bf16)
    w_tar = params["ee_w1"][D:2 * D].astype(bf16)
    w_rbf = params["ee_w1"][2 * D:].astype(bf16)
    inv_sigma = float(1.0 / sigma)
    mu_scaled = (mu * inv_sigma).reshape(1, R).astype(f32)   # mu/sigma, folded in wrapper
    kernel = functools.partial(edge_kernel, inv_sigma=inv_sigma)

    edge_embed, edge_sum, mask_sum = pl.pallas_call(
        kernel,
        out_shape=(jax.ShapeDtypeStruct((B, N, N, E), edge_out_dtype),
                   jax.ShapeDtypeStruct((B, N, E), f32),
                   jax.ShapeDtypeStruct((B, 1, N), f32)),
        grid=(B, nI),
        in_specs=[
            pl.BlockSpec((1, TI, 3), lambda b, it: (b, it, 0)),   # pos (i tile)
            pl.BlockSpec((1, 3, N), lambda b, it: (b, 0, 0)),     # pos^T (all j)
            pl.BlockSpec((1, TI, D), lambda b, it: (b, it, 0)),   # node_embed (i tile, bf16)
            pl.BlockSpec((1, N, D), lambda b, it: (b, 0, 0)),     # node_embed (all j, bf16)
            pl.BlockSpec((1, TI, N), lambda b, it: (b, it, 0)),   # edge_mask tile
            pl.BlockSpec((1, R), lambda b, it: (0, 0)),           # mu/sigma
            pl.BlockSpec((D, E), lambda b, it: (0, 0)),           # w_src
            pl.BlockSpec((D, E), lambda b, it: (0, 0)),           # w_tar
            pl.BlockSpec((R, E), lambda b, it: (0, 0)),           # w_rbf
            pl.BlockSpec((1, E), lambda b, it: (0, 0)),           # b1
            pl.BlockSpec((E, E), lambda b, it: (0, 0)),           # w2
            pl.BlockSpec((1, E), lambda b, it: (0, 0)),           # b2
            pl.BlockSpec((E, E), lambda b, it: (0, 0)),           # w3
            pl.BlockSpec((1, E), lambda b, it: (0, 0)),           # b3
            pl.BlockSpec((1, E), lambda b, it: (0, 0)),           # ln gamma
            pl.BlockSpec((1, E), lambda b, it: (0, 0)),           # ln beta
        ],
        out_specs=(pl.BlockSpec((1, TI, N, E), lambda b, it: (b, it, 0, 0)),
                   pl.BlockSpec((1, N, E), lambda b, it: (b, 0, 0)),
                   pl.BlockSpec((1, 1, N), lambda b, it: (b, 0, 0))),
        scratch_shapes=[pltpu.VMEM((N, E), f32)],                 # hoisted src_proj
        compiler_params=pltpu.CompilerParams(
            dimension_semantics=("parallel", "arbitrary"),        # i axis MUST stay arbitrary
            vmem_limit_bytes=vmem_limit),
    )(ligand_pos, ligand_pos_t, node_embed_bf, node_embed_bf, edge_mask,
      mu_scaled,
      w_src, w_tar, w_rbf, params["ee_b1"].reshape(1, E),
      params["ee_w2"].astype(bf16), params["ee_b2"].reshape(1, E),
      params["ee_w3"].astype(bf16), params["ee_b3"].reshape(1, E),
      params["ee_g"].reshape(1, E), params["ee_be"].reshape(1, E))

    # ---- K3: node aggregator + residual, M-tiled ---------------------------------------
    atom_clamp = jnp.minimum(ligand_atom, 1).astype(f32)                 # clamp(max=1)
    scale = (atom_clamp / (mask_sum.reshape(B, N) + 1e-10)).reshape(M, 1)
    w1n = params["na_w1"][:D].astype(bf16)
    w1a = params["na_w1"][D:].astype(bf16)

    node_out2d = pl.pallas_call(
        node_agg_kernel,
        out_shape=jax.ShapeDtypeStruct((M, D), f32),
        grid=(nM,),
        in_specs=[pl.BlockSpec((TM, D), lambda i: (i, 0)),
                  pl.BlockSpec((TM, E), lambda i: (i, 0)),
                  pl.BlockSpec((TM, 1), lambda i: (i, 0)),
                  pl.BlockSpec((D, D), lambda i: (0, 0)),
                  pl.BlockSpec((E, D), lambda i: (0, 0)),
                  pl.BlockSpec((1, D), lambda i: (0, 0)),
                  pl.BlockSpec((D, D), lambda i: (0, 0)),
                  pl.BlockSpec((1, D), lambda i: (0, 0)),
                  pl.BlockSpec((D, D), lambda i: (0, 0)),
                  pl.BlockSpec((1, D), lambda i: (0, 0)),
                  pl.BlockSpec((1, D), lambda i: (0, 0)),
                  pl.BlockSpec((1, D), lambda i: (0, 0))],
        out_specs=pl.BlockSpec((TM, D), lambda i: (i, 0)),
        compiler_params=mtile_params,
    )(node_embed2d, edge_sum.reshape(M, E), scale, w1n, w1a,
      params["na_b1"].reshape(1, D), params["na_w2"].astype(bf16),
      params["na_b2"].reshape(1, D), params["na_w3"].astype(bf16),
      params["na_b3"].reshape(1, D), params["na_g"].reshape(1, D),
      params["na_be"].reshape(1, D))

    return node_out2d.reshape(B, N, D), edge_embed


# ----------------------------------------------------------------------------- reference (pure JAX)
def reference_forward(params, ligand_atom, ligand_pos, edge_mask, mu, sigma,
                      mxu_dtype=jnp.float32):
    # mxu_dtype=jnp.bfloat16 reproduces the kernels' MXU numerics (bf16 inputs, f32 acc),
    # so the comparison isolates kernel structure rather than bf16 rounding.
    B, N = ligand_atom.shape
    prec = jax.lax.Precision.HIGHEST if mxu_dtype == jnp.float32 else None

    def mm(eq, x, w):
        return jnp.einsum(eq, x.astype(mxu_dtype), w.astype(mxu_dtype),
                          precision=prec, preferred_element_type=jnp.float32)

    emb = params["emb_table"][ligand_atom]
    h = mm("bnd,de->bne", _silu(emb), params["ne_w"]) + params["ne_b"]
    node_embed = _layernorm(h, params["ne_g"], params["ne_be"])

    diff = ligand_pos[:, None, :, :] - ligand_pos[:, :, None, :]
    radial = jnp.sum(diff ** 2, axis=-1)
    dist = jnp.sqrt(radial + 1e-10) * edge_mask
    rbf = jnp.exp(-(((dist[..., None] - mu.reshape(1, 1, 1, -1)) / sigma) ** 2))
    edge_feat = rbf * edge_mask[..., None]

    Dm = node_embed.shape[-1]
    src = jnp.broadcast_to(node_embed[:, None, :, :], (B, N, N, Dm))
    tar = jnp.broadcast_to(node_embed[:, :, None, :], (B, N, N, Dm))
    cat = jnp.concatenate([src, tar, edge_feat], axis=-1)
    h = mm("bijc,ce->bije", cat, params["ee_w1"]) + params["ee_b1"]
    h = _silu(h)
    h = _silu(mm("bije,ef->bijf", h, params["ee_w2"]) + params["ee_b2"])
    h = mm("bije,ef->bijf", h, params["ee_w3"]) + params["ee_b3"]
    edge_embed = _layernorm(h, params["ee_g"], params["ee_be"])

    denom = jnp.sum(edge_mask[..., None], axis=1) + 1e-10
    atom_clamp = jnp.minimum(ligand_atom, 1).astype(jnp.float32)[..., None]
    src_agg = jnp.sum(edge_embed, axis=1) / denom * atom_clamp
    cat2 = jnp.concatenate([node_embed, src_agg], axis=-1)
    h = mm("bnc,cd->bnd", cat2, params["na_w1"]) + params["na_b1"]
    h = _silu(h)
    h = _silu(mm("bnd,de->bne", h, params["na_w2"]) + params["na_b2"])
    h = mm("bnd,de->bne", h, params["na_w3"]) + params["na_b3"]
    node_out = node_embed + _layernorm(h, params["na_g"], params["na_be"])
    return node_out, edge_embed


# ----------------------------------------------------------------------------- params
def init_params(key, num_atom_type, D, E, R):
    ks = jax.random.split(key, 8)

    def lin(k, fin, fout):
        kw, kb = jax.random.split(k)
        lim = 1.0 / math.sqrt(fin)
        w = jax.random.uniform(kw, (fin, fout), jnp.float32, -lim, lim)
        b = jax.random.uniform(kb, (fout,), jnp.float32, -lim, lim)
        return w, b

    emb = jax.random.normal(ks[0], (num_atom_type, D), jnp.float32)
    emb = emb.at[0].set(0.0)  # padding_idx=0
    ne_w, ne_b = lin(ks[1], D, D)
    ee_w1, ee_b1 = lin(ks[2], 2 * D + R, E)
    ee_w2, ee_b2 = lin(ks[3], E, E)
    ee_w3, ee_b3 = lin(ks[4], E, E)
    na_w1, na_b1 = lin(ks[5], D + E, D)
    na_w2, na_b2 = lin(ks[6], D, D)
    na_w3, na_b3 = lin(ks[7], D, D)
    return dict(
        emb_table=emb,
        ne_w=ne_w, ne_b=ne_b, ne_g=jnp.ones((D,), jnp.float32), ne_be=jnp.zeros((D,), jnp.float32),
        ee_w1=ee_w1, ee_b1=ee_b1, ee_w2=ee_w2, ee_b2=ee_b2, ee_w3=ee_w3, ee_b3=ee_b3,
        ee_g=jnp.ones((E,), jnp.float32), ee_be=jnp.zeros((E,), jnp.float32),
        na_w1=na_w1, na_b1=na_b1, na_w2=na_w2, na_b2=na_b2, na_w3=na_w3, na_b3=na_b3,
        na_g=jnp.ones((D,), jnp.float32), na_be=jnp.zeros((D,), jnp.float32),
    )


# ----------------------------------------------------------------------------- main
if __name__ == "__main__":
    B, N = 2, 8
    NUM_ATOM_TYPE, D, E, R = 6, 32, 32, 16
    D_MIN, D_MAX = 0.0, 6.0

    key = jax.random.PRNGKey(0)
    kp, ka, kx, km = jax.random.split(key, 4)
    params = init_params(kp, NUM_ATOM_TYPE, D, E, R)
    mu = jnp.linspace(D_MIN, D_MAX, R).astype(jnp.float32)
    sigma = (D_MAX - D_MIN) / R

    ligand_atom = jax.random.randint(ka, (B, N), 0, NUM_ATOM_TYPE).astype(jnp.int32)
    ligand_pos = jax.random.normal(kx, (B, N, 3), jnp.float32) * 2.0
    rand_mask = (jax.random.uniform(km, (B, N, N)) > 0.3).astype(jnp.float32)
    edge_mask = rand_mask * (1.0 - jnp.eye(N, dtype=jnp.float32)[None])

    node_out, edge_out = mol_embedder_pallas(params, ligand_atom, ligand_pos, edge_mask, mu, sigma)
    jax.block_until_ready((node_out, edge_out))

    # Check against an MXU-matched reference (bf16 matmul inputs, f32 accumulation).
    # node_out is f32; edge_out is bf16 by default (perf-review writeback halving), so its
    # tolerance additionally covers one bf16 quantization of O(1) LayerNorm outputs.
    node_ref, edge_ref = reference_forward(params, ligand_atom, ligand_pos, edge_mask,
                                           mu, sigma, mxu_dtype=jnp.bfloat16)
    np.testing.assert_allclose(np.asarray(node_out), np.asarray(node_ref),
                               atol=1e-2, rtol=1e-2)
    np.testing.assert_allclose(np.asarray(edge_out.astype(jnp.float32)), np.asarray(edge_ref),
                               atol=3e-2, rtol=3e-2)
    print("KERNEL_OK")
</pallas_src>

<mosaic_0001>
module attributes {stable_mosaic.version = 11 : i64} {
  func.func @node_embedder_kernel(%arg0: i32, %arg1: memref<16x32xf32, #tpu.memory_space<vmem>>, %arg2: memref<32x32xbf16, #tpu.memory_space<vmem>>, %arg3: memref<1x32xf32, #tpu.memory_space<vmem>>, %arg4: memref<1x32xf32, #tpu.memory_space<vmem>>, %arg5: memref<1x32xf32, #tpu.memory_space<vmem>>, %arg6: memref<16x32xf32, #tpu.memory_space<vmem>>, %arg7: memref<16x32xbf16, #tpu.memory_space<vmem>>) attributes {dimension_semantics = [#tpu.dimension_semantics<parallel>], iteration_bounds = array<i64: 1>, scalar_prefetch = 0 : i64, scratch_operands = 0 : i64, tpu.core_type = #tpu.core_type<tc>, window_params = [{transform_indices = @transform_0, window_bounds = array<i64: 16, 32>}, {pipeline_mode = #tpu.pipeline_mode<synchronous>, transform_indices = @transform_1, window_bounds = array<i64: 32, 32>}, {pipeline_mode = #tpu.pipeline_mode<synchronous>, transform_indices = @transform_2, window_bounds = array<i64: 1, 32>}, {pipeline_mode = #tpu.pipeline_mode<synchronous>, transform_indices = @transform_3, window_bounds = array<i64: 1, 32>}, {pipeline_mode = #tpu.pipeline_mode<synchronous>, transform_indices = @transform_4, window_bounds = array<i64: 1, 32>}, {transform_indices = @transform_5, window_bounds = array<i64: 16, 32>}, {transform_indices = @transform_6, window_bounds = array<i64: 16, 32>}]} {
    %c0 = arith.constant 0 : index
    %c0_0 = arith.constant 0 : index
    %0 = vector.load %arg1[%c0, %c0_0] : memref<16x32xf32, #tpu.memory_space<vmem>>, vector<16x32xf32>
    %1 = arith.negf %0 : vector<16x32xf32>
    %2 = math.exp %1 : vector<16x32xf32>
    %cst = arith.constant 1.000000e+00 : f32
    %3 = vector.broadcast %cst : f32 to vector<16x32xf32>
    %4 = arith.addf %3, %2 : vector<16x32xf32>
    %5 = arith.divf %3, %4 : vector<16x32xf32>
    %6 = arith.mulf %0, %5 : vector<16x32xf32>
    %7 = arith.truncf %6 : vector<16x32xf32> to vector<16x32xbf16>
    %c0_1 = arith.constant 0 : index
    %c0_2 = arith.constant 0 : index
    %8 = vector.load %arg2[%c0_1, %c0_2] : memref<32x32xbf16, #tpu.memory_space<vmem>>, vector<32x32xbf16>
    %cst_3 = arith.constant dense<0.000000e+00> : vector<16x32xf32>
    %9 = tpu.matmul %7, %8, %cst_3 {dimension_numbers = #tpu.dot_dimension_numbers<[1], [0], [0], [1], [0, 0, 1, 1], [], []>} : vector<16x32xbf16>, vector<32x32xbf16>, vector<16x32xf32> -> vector<16x32xf32>
    %c0_4 = arith.constant 0 : index
    %c0_5 = arith.constant 0 : index
    %10 = vector.load %arg3[%c0_4, %c0_5] : memref<1x32xf32, #tpu.memory_space<vmem>>, vector<1x32xf32>
    %11 = vector.broadcast %10 : vector<1x32xf32> to vector<16x32xf32>
    %12 = arith.addf %9, %11 : vector<16x32xf32>
    %c0_6 = arith.constant 0 : index
    %c0_7 = arith.constant 0 : index
    %13 = vector.load %arg4[%c0_6, %c0_7] : memref<1x32xf32, #tpu.memory_space<vmem>>, vector<1x32xf32>
    %c0_8 = arith.constant 0 : index
    %c0_9 = arith.constant 0 : index
    %14 = vector.load %arg5[%c0_8, %c0_9] : memref<1x32xf32, #tpu.memory_space<vmem>>, vector<1x32xf32>
    %cst_10 = arith.constant dense<0.000000e+00> : vector<16xf32>
    %15 = vector.multi_reduction <add>, %12, %cst_10 [1] : vector<16x32xf32> to vector<16xf32>
    %16 = vector.shape_cast %15 : vector<16xf32> to vector<16x1xf32>
    %cst_11 = arith.constant 3.200000e+01 : f32
    %17 = vector.broadcast %cst_11 : f32 to vector<16x1xf32>
    %18 = arith.divf %16, %17 : vector<16x1xf32>
    %19 = vector.broadcast %18 : vector<16x1xf32> to vector<16x32xf32>
    %20 = arith.subf %12, %19 : vector<16x32xf32>
    %21 = arith.mulf %20, %20 : vector<16x32xf32>
    %cst_12 = arith.constant dense<0.000000e+00> : vector<16xf32>
    %22 = vector.multi_reduction <add>, %21, %cst_12 [1] : vector<16x32xf32> to vector<16xf32>
    %23 = vector.shape_cast %22 : vector<16xf32> to vector<16x1xf32>
    %cst_13 = arith.constant 3.200000e+01 : f32
    %24 = vector.broadcast %cst_13 : f32 to vector<16x1xf32>
    %25 = arith.divf %23, %24 : vector<16x1xf32>
    %26 = vector.broadcast %18 : vector<16x1xf32> to vector<16x32xf32>
    %27 = arith.subf %12, %26 : vector<16x32xf32>
    %cst_14 = arith.constant 9.99999974E-6 : f32
    %28 = vector.broadcast %cst_14 : f32 to vector<16x1xf32>
    %29 = arith.addf %25, %28 : vector<16x1xf32>
    %30 = math.rsqrt %29 : vector<16x1xf32>
    %31 = vector.broadcast %30 : vector<16x1xf32> to vector<16x32xf32>
    %32 = arith.mulf %27, %31 : vector<16x32xf32>
    %33 = vector.broadcast %13 : vector<1x32xf32> to vector<16x32xf32>
    %34 = arith.mulf %32, %33 : vector<16x32xf32>
    %35 = vector.broadcast %14 : vector<1x32xf32> to vector<16x32xf32>
    %36 = arith.addf %34, %35 : vector<16x32xf32>
    %c0_15 = arith.constant 0 : index
    %c0_16 = arith.constant 0 : index
    %37 = vector.load %arg6[%c0_15, %c0_16] : memref<16x32xf32, #tpu.memory_space<vmem>>, vector<16x32xf32>
    tpu.vector_store %arg6[%c0_15, %c0_16], %36 {strides = array<i32>} : memref<16x32xf32, #tpu.memory_space<vmem>>, vector<16x32xf32>,
    %38 = arith.truncf %36 : vector<16x32xf32> to vector<16x32xbf16>
    %c0_17 = arith.constant 0 : index
    %c0_18 = arith.constant 0 : index
    %39 = vector.load %arg7[%c0_17, %c0_18] : memref<16x32xbf16, #tpu.memory_space<vmem>>, vector<16x32xbf16>
    tpu.vector_store %arg7[%c0_17, %c0_18], %38 {strides = array<i32>} : memref<16x32xbf16, #tpu.memory_space<vmem>>, vector<16x32xbf16>,
    return
  }
  func.func @transform_0(%arg0: i32) -> (i32, i32) {
    %c0_i32 = arith.constant 0 : i32
    %c0_i32_0 = arith.constant 0 : i32
    return %arg0, %c0_i32 : i32, i32
  }
  func.func @transform_1(%arg0: i32) -> (i32, i32) {
    %c0_i32 = arith.constant 0 : i32
    %c0_i32_0 = arith.constant 0 : i32
    %c0_i32_1 = arith.constant 0 : i32
    return %c0_i32, %c0_i32_0 : i32, i32
  }
  func.func @transform_2(%arg0: i32) -> (i32, i32) {
    %c0_i32 = arith.constant 0 : i32
    %c0_i32_0 = arith.constant 0 : i32
    %c0_i32_1 = arith.constant 0 : i32
    return %c0_i32, %c0_i32_0 : i32, i32
  }
  func.func @transform_3(%arg0: i32) -> (i32, i32) {
    %c0_i32 = arith.constant 0 : i32
    %c0_i32_0 = arith.constant 0 : i32
    %c0_i32_1 = arith.constant 0 : i32
    return %c0_i32, %c0_i32_0 : i32, i32
  }
  func.func @transform_4(%arg0: i32) -> (i32, i32) {
    %c0_i32 = arith.constant 0 : i32
    %c0_i32_0 = arith.constant 0 : i32
    %c0_i32_1 = arith.constant 0 : i32
    return %c0_i32, %c0_i32_0 : i32, i32
  }
  func.func @transform_5(%arg0: i32) -> (i32, i32) {
    %c0_i32 = arith.constant 0 : i32
    %c0_i32_0 = arith.constant 0 : i32
    return %arg0, %c0_i32 : i32, i32
  }
  func.func @transform_6(%arg0: i32) -> (i32, i32) {
    %c0_i32 = arith.constant 0 : i32
    %c0_i32_0 = arith.constant 0 : i32
    return %arg0, %c0_i32 : i32, i32
  }
}

</mosaic_0001>

<llo_original>
// kernel: tpu_custom_call.1
$region0: #{tpu_custom_call.1}
  #allocation0 [shape = 'u32[]', space=smem, size = 0x4, offset = 0x4, fixed_abs, tag = 'smem constant byte address 0x4 - core index']
  #allocation1 [shape = 'u32[144,128]{1,0:T(1,128)}', space=vmem, size = 0x12000, scoped, tag = 'internal scratch']
  %s0 = inlined_call_operand.hbm [shape: f32[16,32], index: 0, kind: input, shape index: {}]
  %s1 = inlined_call_operand.hbm [shape: bf16[32,32], index: 1, kind: input, shape index: {}]
  %s2 = inlined_call_operand.vmem [shape: f32[1,32], index: 2, kind: input, shape index: {}]
  %s3 = inlined_call_operand.vmem [shape: f32[1,32], index: 3, kind: input, shape index: {}]
  %s4 = inlined_call_operand.vmem [shape: f32[1,32], index: 4, kind: input, shape index: {}]
  %s5 = inlined_call_operand.hbm [shape: f32[16,32], index: 5, kind: output, shape index: {0}]
  %s6 = inlined_call_operand.hbm [shape: bf16[16,32], index: 6, kind: output, shape index: {1}]
  %7 = xla_tuple %s5, %s6
  %s8 = sld [smem:[#allocation0]]
  $region46: #{tpu_custom_call.1} parent=0
    _
  %s10 = ssub.s32 1, %s8
  %s11 = scalar_select 0, %s10, %s8
  $region1: #{tpu_custom_call.1} parent=0
    #allocation2 [shape = 'u8[8192]{0}', space=vmem, size = 0x2000, scoped, tag = 'input window, operand 0, single buffered']
    #allocation3 [shape = 's32[1]{0}', space=sflag, size = 0x4, scoped, tag = 'scoped memory for tpu_custom_call.1']
    #allocation4 [shape = 's32[1]{0}', space=sflag, size = 0x4, scoped, tag = 'scoped memory for tpu_custom_call.1']
    #allocation5 [shape = 'u8[8192]{0}', space=vmem, size = 0x2000, scoped, tag = 'input window, operand 1, single buffered']
    #allocation6 [shape = 's32[1]{0}', space=sflag, size = 0x4, scoped, tag = 'scoped memory for tpu_custom_call.1']
    #allocation7 [shape = 'u8[8192]{0}', space=vmem, size = 0x2000, scoped, tag = 'output window, operand 0, single buffered']
    #allocation8 [shape = 'u8[4096]{0}', space=vmem, size = 0x1000, scoped, tag = 'output window, operand 1, single buffered']
    #allocation9 [shape = 's32[1]{0}', space=sflag, size = 0x4, scoped, tag = 'scoped memory for tpu_custom_call.1']
    %12 = vsyncpa [#allocation3], 0
    %13 = vsyncpa [#allocation6], 0
    %14 = vsyncpa [#allocation4], 0
    %15 = vsyncpa [#allocation9], 0
    // Predicated region
    $region2: #{tpu_custom_call.1} parent=1 // pred_check
      _
    $region3: #{tpu_custom_call.1} parent=1 // pred_check_branch
      %17 = sbr.rel (0) target = $region5
    $region4: #{tpu_custom_call.1} parent=1 // pred_region
      %s19 = ssub.s32 256, 256
      %20 = vsyncadd [#allocation3], %s19
      %s21 = sshll.u32 [#allocation2], 4
      %s22 = int_to_ptr.vmem [resolvable:$true] %s21
      %27 = dma.hbm_to_vmem [thread:$0]  %s0, 256, %s22, [#allocation3], 128, 128, 8
    $region5: #{tpu_custom_call.1} parent=1 // pred_fallthru
      _
    // Predicated region
    $region6: #{tpu_custom_call.1} parent=1 // pred_check
      _
    $region7: #{tpu_custom_call.1} parent=1 // pred_check_branch
      %29 = sbr.rel (0) target = $region9
    $region8: #{tpu_custom_call.1} parent=1 // pred_region
      %s31 = ssub.s32 256, 256
      %32 = vsyncadd [#allocation6], %s31
      %s33 = sshll.u32 [#allocation5], 4
      %s34 = int_to_ptr.vmem [resolvable:$true] %s33
      %39 = dma.hbm_to_vmem [thread:$0]  %s1, 256, %s34, [#allocation6], 64, 64, 4
    $region9: #{tpu_custom_call.1} parent=1 // pred_fallthru
      _
    // Predicated region
    $region10: #{tpu_custom_call.1} parent=1 // pred_check
      _
    $region11: #{tpu_custom_call.1} parent=1 // pred_check_branch
      %41 = sbr.rel (0) target = $region13
    $region12: #{tpu_custom_call.1} parent=1 // pred_region
      _
    $region13: #{tpu_custom_call.1} parent=1 // pred_fallthru
      _
    // Predicated region
    $region14: #{tpu_custom_call.1} parent=1 // pred_check
      _
    $region15: #{tpu_custom_call.1} parent=1 // pred_check_branch
      %43 = sbr.rel (0) target = $region17
    $region16: #{tpu_custom_call.1} parent=1 // pred_region
      _
    $region17: #{tpu_custom_call.1} parent=1 // pred_fallthru
      _
    // Predicated region
    $region18: #{tpu_custom_call.1} parent=1 // pred_check
      _
    $region19: #{tpu_custom_call.1} parent=1 // pred_check_branch
      %45 = sbr.rel (0) target = $region21
    $region20: #{tpu_custom_call.1} parent=1 // pred_region
      _
    $region21: #{tpu_custom_call.1} parent=1 // pred_fallthru
      _
    // Predicated region
    $region22: #{tpu_custom_call.1} parent=1 // pred_check
      _
    $region23: #{tpu_custom_call.1} parent=1 // pred_check_branch
      %47 = sbr.rel (0) target = $region25
    $region24: #{tpu_custom_call.1} parent=1 // pred_region
      %48 = dma.done [#allocation3], 256
    $region25: #{tpu_custom_call.1} parent=1 // pred_fallthru
      _
    // Predicated region
    $region26: #{tpu_custom_call.1} parent=1 // pred_check
      _
    $region27: #{tpu_custom_call.1} parent=1 // pred_check_branch
      %50 = sbr.rel (0) target = $region29
    $region28: #{tpu_custom_call.1} parent=1 // pred_region
      %51 = dma.done [#allocation6], 256
    $region29: #{tpu_custom_call.1} parent=1 // pred_fallthru
      _
    %v53 = vld [vmem:[#allocation2] sm:$0xff]
    %v54 = vld [vmem:[#allocation2 + $0x8] sm:$0xff]
    %v55 = vxor.u32 %v53, 2147483648
    %v56 = vxor.u32 %v54, 2147483648
    %v57 = vmul.f32 %v55, 1.442695
    %v58 = vpow.pop %v57
    %v59 = vmul.f32 %v56, 1.442695
    %v60 = vpow.pop %v59
    %v61 = vadd.f32 %v58, 1.0
    %v62 = vadd.f32 %v60, 1.0
    %v63 = vrcp.pop %v61
    %v64 = vmul.f32 1.0, %v63
    %v65 = vrcp.pop %v62
    %v66 = vmul.f32 1.0, %v65
    %v67 = vmul.f32 %v53, %v64
    %v68 = vmul.f32 %v54, %v66
    %v69 = vpack.c.bf16 %v68, %v67
    %v70 = vld [vmem:[#allocation5] sm:$0xf]
    %v71 = vld [vmem:[#allocation5 + $0x4] sm:$0xf]
    %v72 = vld [vmem:[#allocation5 + $0x8] sm:$0xf]
    %v73 = vld [vmem:[#allocation5 + $0xc] sm:$0xf]
    %v74 = vld [vmem:[%s2] sm:$0x1]
    %v76 = vlaneseq
    %v77 = vshrl.u32 %v76, 7
    %v78 = vsub.s32 0, %v77
    %v79 = vrot.slane %v74, %v78
    %v85 = vunpack.c.l.b16 %v70
    %v86 = vunpack.c.l.b16 %v71
    %v87 = vunpack.c.l.b16 %v72
    %v88 = vunpack.c.l.b16 %v73
    %v89 = vpack.c.b16 %v86, %v85
    %v90 = vpack.c.b16 %v88, %v87
    %vm93 = vcmask 261120
    %v95 = vsel %vm93, %v69, 0
    %97 = vmatprep.subr.bf16.mxu0 0
    %98 = vmatpush1.bf16.msra.mxu0 0
    %99 = vmatprep.subr.bf16.mxu0 0
    %100 = vmatpush1.bf16.msra.mxu0 0
    %101 = vmatprep.subr.bf16.mxu0 0
    %102 = vmatpush1.bf16.msra.mxu0 0
    %103 = vmatprep.subr.bf16.mxu0 0
    %104 = vmatpush1.bf16.msra.mxu0 0
    %105 = vmatprep.subr.bf16.mxu0 0
    %106 = vmatpush1.bf16.msra.mxu0 0
    %107 = vmatprep.subr.bf16.mxu0 0
    %108 = vmatpush1.bf16.msra.mxu0 0
    %109 = vmatprep.subr.bf16.mxu0 0
    %110 = vmatpush1.bf16.msra.mxu0 %v90
    %111 = vmatprep.subr.bf16.mxu0 0
    %112 = vmatpush1.bf16.msra.mxu0 %v89
    %113 = vmatprep.subr.bf16.mxu0 0
    %114 = vmatpush2.bf16.msra.mxu0 0
    %115 = vmatprep.subr.bf16.mxu0 0
    %116 = vmatpush2.bf16.msra.mxu0 0
    %117 = vmatprep.subr.bf16.mxu0 0
    %118 = vmatpush2.bf16.msra.mxu0 0
    %119 = vmatprep.subr.bf16.mxu0 0
    %120 = vmatpush2.bf16.msra.mxu0 0
    %121 = vmatprep.subr.bf16.mxu0 0
    %122 = vmatpush2.bf16.msra.mxu0 0
    %123 = vmatprep.subr.bf16.mxu0 0
    %124 = vmatpush2.bf16.msra.mxu0 0
    %125 = vmatprep.subr.bf16.mxu0 0
    %126 = vmatpush2.bf16.msra.mxu0 0
    %127 = vmatprep.subr.bf16.mxu0 0
    %128 = vmatpush2.bf16.msra.mxu0 0
    %129 = vmatprep.mubr.bf16.mxu0 0
    %130 = vmatmul.mubr.bf16.gmra.mxu0 %v95
    %v131 = vpop.f32.mrf.mxu0
    %v132 = vadd.f32 %v79, %v131
    %v133 = vpop.f32.mrf.mxu0
    %v134 = vpop.f32.mrf.mxu0
    %v135 = vadd.f32 %v79, %v134
    %v136 = vpop.f32.mrf.mxu0
    %137 = vdwg.mxu0
    %v138 = vld [vmem:[%s3] sm:$0x1]
    %v139 = vld [vmem:[%s4] sm:$0x1]
    %v140 = vsel %vm93, %v132, 0.0
    %141 = vadd.xlane.f32.xlu0 %v140
    %v142 = vpop.xlane.xlu0 %141
    %v143 = vsel %vm93, %v135, 0.0
    %144 = vadd.xlane.f32.xlu0 %v143
    %v145 = vpop.xlane.xlu0 %144
    %v146 = vrcp.pop 32.0
    %v147 = vmul.f32 %v142, %v146
    %v148 = vmul.f32 %v145, %v146
    %v149 = vsub.f32 %v132, %v147
    %v150 = vsub.f32 %v135, %v148
    %v151 = vmul.f32 %v149, %v149
    %v152 = vmul.f32 %v150, %v150
    %v153 = vsel %vm93, %v151, 0.0
    %154 = vadd.xlane.f32.xlu0 %v153
    %v155 = vpop.xlane.xlu0 %154
    %v156 = vsel %vm93, %v152, 0.0
    %157 = vadd.xlane.f32.xlu0 %v156
    %v158 = vpop.xlane.xlu0 %157
    %v159 = vmul.f32 %v155, %v146
    %v160 = vmul.f32 %v158, %v146
    %v161 = vadd.f32 %v159, 1e-05
    %v162 = vadd.f32 %v160, 1e-05
    %v163 = vrsqrt.pop %v161
    %v164 = vrsqrt.pop %v162
    %v165 = vmul.f32 %v149, %v163
    %v166 = vmul.f32 %v150, %v164
    %v168 = vlaneseq
    %v169 = vshrl.u32 %v168, 7
    %v170 = vsub.s32 0, %v169
    %v171 = vrot.slane %v138, %v170
    %v173 = vmul.f32 %v165, %v171
    %v174 = vmul.f32 %v166, %v171
    %v176 = vlaneseq
    %v177 = vshrl.u32 %v176, 7
    %v178 = vsub.s32 0, %v177
    %v179 = vrot.slane %v139, %v178
    %v181 = vadd.f32 %v173, %v179
    %v182 = vadd.f32 %v174, %v179
    %183 = vst.msk [vmem:[#allocation7] sm:$0xff] %vm93, %v181
    %184 = vst.msk [vmem:[#allocation7 + $0x8] sm:$0xff] %vm93, %v182
    %v185 = vpack.c.bf16 %v182, %v181
    %v187 = vunpack.c.l.b16 %v185
    %v188 = vunpack.c.h.b16 %v185
    %v189 = vpack.c.b16 %v187, %v187
    %v190 = vpack.c.b16 %v188, %v188
    %vm193 = vcmask 257024
    %194 = vst.msk [vmem:[#allocation8] sm:$0xf] %vm193, %v189
    %195 = vst.msk [vmem:[#allocation8 + $0x4] sm:$0xf] %vm193, %v190
    // Predicated region
    $region30: #{tpu_custom_call.1} parent=1 // pred_check
      _
    $region31: #{tpu_custom_call.1} parent=1 // pred_check_branch
      %197 = sbr.rel (0) target = $region33
    $region32: #{tpu_custom_call.1} parent=1 // pred_region
      %s199 = ssub.s32 256, 256
      %200 = vsyncadd [#allocation4], %s199
      %s201 = sshll.u32 [#allocation7], 4
      %s202 = int_to_ptr.vmem [resolvable:$true] %s201
      %207 = dma.vmem_to_hbm [thread:$0]  %s202, 256, %s5, [#allocation4], 128, 128, 8
    $region33: #{tpu_custom_call.1} parent=1 // pred_fallthru
      _
    // Predicated region
    $region34: #{tpu_custom_call.1} parent=1 // pred_check
      _
    $region35: #{tpu_custom_call.1} parent=1 // pred_check_branch
      %209 = sbr.rel (0) target = $region37
    $region36: #{tpu_custom_call.1} parent=1 // pred_region
      %s211 = ssub.s32 128, 128
      %212 = vsyncadd [#allocation9], %s211
      %s213 = sshll.u32 [#allocation8], 4
      %s214 = int_to_ptr.vmem [resolvable:$true] %s213
      %219 = dma.vmem_to_hbm [thread:$0]  %s214, 128, %s6, [#allocation9], 64, 64, 4
    $region37: #{tpu_custom_call.1} parent=1 // pred_fallthru
      _
    // Predicated region
    $region38: #{tpu_custom_call.1} parent=1 // pred_check
      _
    $region39: #{tpu_custom_call.1} parent=1 // pred_check_branch
      %221 = sbr.rel (0) target = $region41
    $region40: #{tpu_custom_call.1} parent=1 // pred_region
      %222 = dma.done [#allocation4], 256
    $region41: #{tpu_custom_call.1} parent=1 // pred_fallthru
      _
    // Predicated region
    $region42: #{tpu_custom_call.1} parent=1 // pred_check
      _
    $region43: #{tpu_custom_call.1} parent=1 // pred_check_branch
      %224 = sbr.rel (0) target = $region45
    $region44: #{tpu_custom_call.1} parent=1 // pred_region
      %225 = dma.done [#allocation9], 128
    $region45: #{tpu_custom_call.1} parent=1 // pred_fallthru
      _
    %226 = vsyncpa [#allocation3], 1
    %227 = vsyncpa [#allocation6], 1
    %228 = vsyncpa [#allocation4], 1
    %229 = vsyncpa [#allocation9], 1

</llo_original>
